<compile_context>
chip_gen: v6e
topology: v6e:2x2x1
jax: 0.10.0
libtpu: 0.0.40
codegen_flags: <defaults>
</compile_context>

<pallas_src>
import functools

import jax
import jax.numpy as jnp
from jax.experimental import pallas as pl
from jax.experimental.pallas import tpu as pltpu


def _round_up(x, m):
    return (x + m - 1) // m * m


def _pick_tile(dim, max_tile, multiple):
    """Use the full (padded) dim if it is small, else a fixed MXU-friendly tile."""
    if dim <= max_tile:
        return _round_up(dim, multiple)
    return max_tile


def _dense_kernel(seed_ref, x_ref, w_ref, b_ref, o_ref, acc_ref, *,
                  dropout_prob, is_train):
    """One (i, j, k) grid step of out = dropout(relu(x @ W^T + b)).

    x_ref:   (tm, tk)  activation tile
    w_ref:   (tn, tk)  weight tile in PyTorch [out_dim, in_dim] layout
    b_ref:   (1,  tn)  bias tile
    o_ref:   (tm, tn)  output tile (written only on the last k step)
    acc_ref: (tm, tn)  f32 accumulator scratch, resident across the k axis
    """
    # Hoist every grid query / scalar read out of pl.when bodies (see header).
    i = pl.program_id(0)
    j = pl.program_id(1)
    k = pl.program_id(2)
    nk = pl.num_programs(2)
    seed = seed_ref[0].astype(jnp.uint32)

    @pl.when(k == 0)
    def _():
        acc_ref[...] = jnp.zeros_like(acc_ref)

    # Contract last axes of both operands: (tm, tk) x (tn, tk) -> (tm, tn) on MXU.
    acc_ref[...] += jax.lax.dot_general(
        x_ref[...], w_ref[...],
        dimension_numbers=(((1,), (1,)), ((), ())),
        preferred_element_type=jnp.float32)

    @pl.when(k == nk - 1)
    def _():
        y = acc_ref[...] + b_ref[...]          # bias broadcasts over rows
        y = jnp.maximum(y, jnp.float32(0.0))   # ReLU

        if is_train and dropout_prob > 0.0:
            if dropout_prob >= 1.0:
                y = jnp.zeros_like(y)
            else:
                tm, tn = o_ref.shape
                # Global element coordinates => mask independent of tiling and
                # distinct per output tile.
                row = (jax.lax.broadcasted_iota(jnp.int32, (tm, tn), 0)
                       + i * tm).astype(jnp.uint32)
                col = (jax.lax.broadcasted_iota(jnp.int32, (tm, tn), 1)
                       + j * tn).astype(jnp.uint32)
                # Counter-based integer hash (splitmix32-style); pure VPU int
                # ops, lowers on every TPU generation and in interpret mode.
                h = (row * jnp.uint32(0x9E3779B1)
                     ^ col * jnp.uint32(0x85EBCA77)
                     ^ seed * jnp.uint32(0xC2B2AE3D))
                h = h ^ (h >> 16)
                h = h * jnp.uint32(0x7FEB352D)
                h = h ^ (h >> 15)
                h = h * jnp.uint32(0x846CA68B)
                h = h ^ (h >> 16)
                threshold = jnp.uint32(
                    min(int(round(dropout_prob * (2 ** 32))), 2 ** 32 - 1))
                keep = h >= threshold            # P(drop) ~= dropout_prob
                scale = jnp.float32(1.0 / (1.0 - dropout_prob))
                y = y * jnp.where(keep, scale, jnp.float32(0.0))

        o_ref[...] = y.astype(o_ref.dtype)


def dense_layer(x, weight, bias, *, dropout_prob, is_train, seed=0):
    """x: [B, in_dim] f32; weight: [out_dim, in_dim] (PyTorch Linear layout); bias: [out_dim]."""
    B, in_dim = x.shape
    out_dim = weight.shape[0]

    # Tile sizes: MXU/lane-friendly (tn, tk multiples of 128 lanes, tm multiple
    # of 8 f32 sublanes). Double-buffered footprint with these maxima is
    # ~2.6 MiB, comfortably inside the v7x 64 MiB VMEM (and v5e/v6e).
    tm = _pick_tile(B, 256, 8)
    tn = _pick_tile(out_dim, 256, 128)
    tk = _pick_tile(in_dim, 512, 128)

    Bp = _round_up(B, tm)
    Np = _round_up(out_dim, tn)
    Kp = _round_up(in_dim, tk)

    # Zero padding: padded K columns contribute 0 to the dot; padded rows/cols
    # of the output are sliced away below.
    xp = jnp.pad(x, ((0, Bp - B), (0, Kp - in_dim)))
    wp = jnp.pad(weight, ((0, Np - out_dim), (0, Kp - in_dim)))
    bp = jnp.pad(bias, (0, Np - out_dim)).reshape(1, Np)
    seed_arr = jnp.asarray([seed], dtype=jnp.int32)

    grid = (Bp // tm, Np // tn, Kp // tk)

    kernel = functools.partial(
        _dense_kernel, dropout_prob=float(dropout_prob), is_train=bool(is_train))

    out = pl.pallas_call(
        kernel,
        out_shape=jax.ShapeDtypeStruct((Bp, Np), x.dtype),
        grid=grid,
        in_specs=[
            pl.BlockSpec(memory_space=pltpu.MemorySpace.SMEM),   # seed scalar
            pl.BlockSpec((tm, tk), lambda i, j, k: (i, k)),      # x tile
            pl.BlockSpec((tn, tk), lambda i, j, k: (j, k)),      # W tile ([out,in])
            pl.BlockSpec((1, tn), lambda i, j, k: (0, j)),       # bias tile
        ],
        out_specs=pl.BlockSpec((tm, tn), lambda i, j, k: (i, j)),
        scratch_shapes=[pltpu.VMEM((tm, tn), jnp.float32)],
        compiler_params=pltpu.CompilerParams(
            dimension_semantics=("parallel", "parallel", "arbitrary")),
    )(seed_arr, xp, wp, bp)

    return out[:B, :out_dim]


if __name__ == "__main__":
    B, in_dim, out_dim = 8, 32, 16
    dropout_prob = 0.5

    key = jax.random.PRNGKey(0)
    kx, kw, kb = jax.random.split(key, 3)

    # Deterministic, nn.Linear-like init (uniform in +/- 1/sqrt(in_dim)).
    bound = 1.0 / (in_dim ** 0.5)
    x = jax.random.normal(kx, (B, in_dim), dtype=jnp.float32)
    weight = jax.random.uniform(kw, (out_dim, in_dim), jnp.float32, -bound, bound)
    bias = jax.random.uniform(kb, (out_dim,), jnp.float32, -bound, bound)

    ref_eval = jnp.maximum(
        jnp.matmul(x, weight.T, precision=jax.lax.Precision.HIGHEST) + bias, 0.0)

    # Eval path (isTrain=False): must match the plain-JAX reference.
    out_eval = dense_layer(x, weight, bias, dropout_prob=dropout_prob, is_train=False)
    jax.block_until_ready(out_eval)
    assert out_eval.shape == (B, out_dim)
    assert jnp.allclose(out_eval, ref_eval, atol=2e-4, rtol=2e-4), "eval mismatch"

    # Train path (isTrain=True): inverted dropout applied in-kernel.
    out_train = dense_layer(x, weight, bias, dropout_prob=dropout_prob,
                            is_train=True, seed=123)
    jax.block_until_ready(out_train)
    assert out_train.shape == (B, out_dim)
    # Every entry is either 0 or relu(...)/(1-p): nonzero entries must match scaled eval.
    scaled = ref_eval / (1.0 - dropout_prob)
    nz = out_train != 0.0
    ok = jnp.where(nz, jnp.abs(out_train - scaled) <= 2e-4 + 2e-4 * jnp.abs(scaled), True)
    assert bool(jnp.all(ok)), "train mismatch"

    print("KERNEL_OK")
</pallas_src>

<mosaic_0001>
module attributes {stable_mosaic.version = 11 : i64} {
  func.func @_dense_kernel(%arg0: i32, %arg1: i32, %arg2: i32, %arg3: memref<1xi32, #tpu.memory_space<smem>>, %arg4: memref<8x128xf32, #tpu.memory_space<vmem>>, %arg5: memref<128x128xf32, #tpu.memory_space<vmem>>, %arg6: memref<1x128xf32, #tpu.memory_space<vmem>>, %arg7: memref<8x128xf32, #tpu.memory_space<vmem>>, %arg8: memref<8x128xf32, #tpu.memory_space<vmem>>) attributes {dimension_semantics = [#tpu.dimension_semantics<parallel>, #tpu.dimension_semantics<parallel>, #tpu.dimension_semantics<arbitrary>], iteration_bounds = array<i64: 1, 1, 1>, scalar_prefetch = 0 : i64, scratch_operands = 1 : i64, tpu.core_type = #tpu.core_type<tc>, window_params = [{transform_indices = @transform_0, window_bounds = array<i64: 1>}, {transform_indices = @transform_1, window_bounds = array<i64: 8, 128>}, {transform_indices = @transform_2, window_bounds = array<i64: 128, 128>}, {transform_indices = @transform_3, window_bounds = array<i64: 1, 128>}, {transform_indices = @transform_4, window_bounds = array<i64: 8, 128>}]} {
    %c0_i32 = arith.constant 0 : i32
    %0 = arith.cmpi eq, %arg2, %c0_i32 : i32
    %1 = arith.extui %0 : i1 to i32
    %c0_i32_0 = arith.constant 0 : i32
    %2 = arith.cmpi ne, %1, %c0_i32_0 : i32
    scf.if %2 {
      %cst_10 = arith.constant 0.000000e+00 : f32
      %12 = vector.broadcast %cst_10 : f32 to vector<8x128xf32>
      %c0_11 = arith.constant 0 : index
      %c0_12 = arith.constant 0 : index
      %13 = vector.load %arg8[%c0_11, %c0_12] : memref<8x128xf32, #tpu.memory_space<vmem>>, vector<8x128xf32>
      tpu.vector_store %arg8[%c0_11, %c0_12], %12 {strides = array<i32>} : memref<8x128xf32, #tpu.memory_space<vmem>>, vector<8x128xf32>,
    } else {
    }
    %c0 = arith.constant 0 : index
    %c0_1 = arith.constant 0 : index
    %3 = vector.load %arg8[%c0, %c0_1] : memref<8x128xf32, #tpu.memory_space<vmem>>, vector<8x128xf32>
    %c0_2 = arith.constant 0 : index
    %c0_3 = arith.constant 0 : index
    %4 = vector.load %arg4[%c0_2, %c0_3] : memref<8x128xf32, #tpu.memory_space<vmem>>, vector<8x128xf32>
    %c0_4 = arith.constant 0 : index
    %c0_5 = arith.constant 0 : index
    %5 = vector.load %arg5[%c0_4, %c0_5] : memref<128x128xf32, #tpu.memory_space<vmem>>, vector<128x128xf32>
    %cst = arith.constant dense<0.000000e+00> : vector<8x128xf32>
    %6 = tpu.matmul %4, %5, %cst {dimension_numbers = #tpu.dot_dimension_numbers<[1], [1], [0], [0], [0, 0, 1, 0], [], []>} : vector<8x128xf32>, vector<128x128xf32>, vector<8x128xf32> -> vector<8x128xf32>
    %7 = arith.addf %3, %6 : vector<8x128xf32>
    %c0_6 = arith.constant 0 : index
    %c0_7 = arith.constant 0 : index
    %8 = vector.load %arg8[%c0_6, %c0_7] : memref<8x128xf32, #tpu.memory_space<vmem>>, vector<8x128xf32>
    tpu.vector_store %arg8[%c0_6, %c0_7], %7 {strides = array<i32>} : memref<8x128xf32, #tpu.memory_space<vmem>>, vector<8x128xf32>,
    %c0_i32_8 = arith.constant 0 : i32
    %9 = arith.cmpi eq, %arg2, %c0_i32_8 : i32
    %10 = arith.extui %9 : i1 to i32
    %c0_i32_9 = arith.constant 0 : i32
    %11 = arith.cmpi ne, %10, %c0_i32_9 : i32
    scf.if %11 {
      %c0_10 = arith.constant 0 : index
      %c0_11 = arith.constant 0 : index
      %12 = vector.load %arg8[%c0_10, %c0_11] : memref<8x128xf32, #tpu.memory_space<vmem>>, vector<8x128xf32>
      %c0_12 = arith.constant 0 : index
      %c0_13 = arith.constant 0 : index
      %13 = vector.load %arg6[%c0_12, %c0_13] : memref<1x128xf32, #tpu.memory_space<vmem>>, vector<1x128xf32>
      %14 = vector.broadcast %13 : vector<1x128xf32> to vector<8x128xf32>
      %15 = arith.addf %12, %14 : vector<8x128xf32>
      %cst_14 = arith.constant 0.000000e+00 : f32
      %16 = vector.broadcast %cst_14 : f32 to vector<8x128xf32>
      %17 = arith.maximumf %15, %16 : vector<8x128xf32>
      %c0_15 = arith.constant 0 : index
      %c0_16 = arith.constant 0 : index
      %18 = vector.load %arg7[%c0_15, %c0_16] : memref<8x128xf32, #tpu.memory_space<vmem>>, vector<8x128xf32>
      tpu.vector_store %arg7[%c0_15, %c0_16], %17 {strides = array<i32>} : memref<8x128xf32, #tpu.memory_space<vmem>>, vector<8x128xf32>,
    } else {
    }
    return
  }
  func.func @transform_0(%arg0: i32, %arg1: i32, %arg2: i32) -> i32 {
    %c0_i32 = arith.constant 0 : i32
    %c0_i32_0 = arith.constant 0 : i32
    return %c0_i32 : i32
  }
  func.func @transform_1(%arg0: i32, %arg1: i32, %arg2: i32) -> (i32, i32) {
    %c0_i32 = arith.constant 0 : i32
    return %arg0, %arg2 : i32, i32
  }
  func.func @transform_2(%arg0: i32, %arg1: i32, %arg2: i32) -> (i32, i32) {
    %c0_i32 = arith.constant 0 : i32
    return %arg1, %arg2 : i32, i32
  }
  func.func @transform_3(%arg0: i32, %arg1: i32, %arg2: i32) -> (i32, i32) {
    %c0_i32 = arith.constant 0 : i32
    %c0_i32_0 = arith.constant 0 : i32
    return %c0_i32, %arg1 : i32, i32
  }
  func.func @transform_4(%arg0: i32, %arg1: i32, %arg2: i32) -> (i32, i32) {
    %c0_i32 = arith.constant 0 : i32
    return %arg0, %arg1 : i32, i32
  }
}

</mosaic_0001>

<llo_original>
// kernel: tpu_custom_call.1
$region0: #{tpu_custom_call.1}
  #allocation0 [shape = 'u32[]', space=smem, size = 0x4, offset = 0x4, fixed_abs, tag = 'smem constant byte address 0x4 - core index']
  #allocation1 [shape = 'u32[144,128]{1,0:T(1,128)}', space=vmem, size = 0x12000, scoped, tag = 'internal scratch']
  #allocation2 [shape = 'f32[8,128]{1,0:T(8,128)}', space=vmem, size = 0x1000, scoped, tag = 'scratch operand']
  #allocation3 [shape = 's32[1]{0:T(128)S(6)}', space=smem, size = 0x200, scoped, tag = 'scoped memory for tpu_custom_call.1']
  %s0 = inlined_call_operand.<no memory space> [shape: s32[1], index: 0, kind: input, shape index: {}]
  %s1 = inlined_call_operand.hbm [shape: f32[8,128], index: 1, kind: input, shape index: {}]
  %s2 = inlined_call_operand.hbm [shape: f32[128,128], index: 2, kind: input, shape index: {}]
  %s3 = inlined_call_operand.vmem [shape: f32[1,128], index: 3, kind: input, shape index: {}]
  %s4 = inlined_call_operand.hbm [shape: f32[8,128], index: 4, kind: output, shape index: {}]
  %s5 = sld [smem:[#allocation0]]
  $region42: #{tpu_custom_call.1} parent=0
    _
  %s7 = ssub.s32 1, %s5
  %s8 = scalar_select 0, %s7, %s5
  %9 = sst [smem:[#allocation3]] %s0
  $region1: #{tpu_custom_call.1} parent=0
    #allocation4 [shape = 'u8[4096]{0}', space=vmem, size = 0x1000, scoped, tag = 'input window, operand 1, single buffered']
    #allocation5 [shape = 's32[1]{0}', space=sflag, size = 0x4, scoped, tag = 'scoped memory for tpu_custom_call.1']
    #allocation6 [shape = 's32[1]{0}', space=sflag, size = 0x4, scoped, tag = 'scoped memory for tpu_custom_call.1']
    #allocation7 [shape = 'u8[65536]{0}', space=vmem, size = 0x10000, scoped, tag = 'input window, operand 2, single buffered']
    #allocation8 [shape = 's32[1]{0}', space=sflag, size = 0x4, scoped, tag = 'scoped memory for tpu_custom_call.1']
    #allocation9 [shape = 'u8[4096]{0}', space=vmem, size = 0x1000, scoped, tag = 'output window, operand 0, single buffered']
    %10 = vsyncpa [#allocation5], 0
    %11 = vsyncpa [#allocation8], 0
    %12 = vsyncpa [#allocation6], 0
    // Predicated region
    $region2: #{tpu_custom_call.1} parent=1 // pred_check
      _
    $region3: #{tpu_custom_call.1} parent=1 // pred_check_branch
      %14 = sbr.rel (0) target = $region5
    $region4: #{tpu_custom_call.1} parent=1 // pred_region
      _
    $region5: #{tpu_custom_call.1} parent=1 // pred_fallthru
      _
    // Predicated region
    $region6: #{tpu_custom_call.1} parent=1 // pred_check
      _
    $region7: #{tpu_custom_call.1} parent=1 // pred_check_branch
      %16 = sbr.rel (0) target = $region9
    $region8: #{tpu_custom_call.1} parent=1 // pred_region
      %s18 = ssub.s32 128, 128
      %19 = vsyncadd [#allocation5], %s18
      %s21 = sshll.u32 [#allocation4], 4
      %s22 = int_to_ptr.vmem [resolvable:$true] %s21
      %24 = dma.hbm_to_vmem [thread:$0]  %s1, 128, %s22, [#allocation5]
    $region9: #{tpu_custom_call.1} parent=1 // pred_fallthru
      _
    // Predicated region
    $region10: #{tpu_custom_call.1} parent=1 // pred_check
      _
    $region11: #{tpu_custom_call.1} parent=1 // pred_check_branch
      %26 = sbr.rel (0) target = $region13
    $region12: #{tpu_custom_call.1} parent=1 // pred_region
      %s28 = ssub.s32 2048, 2048
      %29 = vsyncadd [#allocation8], %s28
      %s30 = sshll.u32 [#allocation7], 4
      %s31 = int_to_ptr.vmem [resolvable:$true] %s30
      %36 = dma.hbm_to_vmem [thread:$0]  %s2, 2048, %s31, [#allocation8], 128, 128, 8
    $region13: #{tpu_custom_call.1} parent=1 // pred_fallthru
      _
    // Predicated region
    $region14: #{tpu_custom_call.1} parent=1 // pred_check
      _
    $region15: #{tpu_custom_call.1} parent=1 // pred_check_branch
      %38 = sbr.rel (0) target = $region17
    $region16: #{tpu_custom_call.1} parent=1 // pred_region
      _
    $region17: #{tpu_custom_call.1} parent=1 // pred_fallthru
      _
    // Predicated region
    $region18: #{tpu_custom_call.1} parent=1 // pred_check
      _
    $region19: #{tpu_custom_call.1} parent=1 // pred_check_branch
      %40 = sbr.rel (0) target = $region21
    $region20: #{tpu_custom_call.1} parent=1 // pred_region
      %41 = dma.done [#allocation5], 128
    $region21: #{tpu_custom_call.1} parent=1 // pred_fallthru
      _
    // Predicated region
    $region22: #{tpu_custom_call.1} parent=1 // pred_check
      _
    $region23: #{tpu_custom_call.1} parent=1 // pred_check_branch
      %43 = sbr.rel (0) target = $region25
    $region24: #{tpu_custom_call.1} parent=1 // pred_region
      %44 = dma.done [#allocation8], 2048
    $region25: #{tpu_custom_call.1} parent=1 // pred_fallthru
      _
    %p45 = scmp.eq.s32.totalorder 0, 0
    // Predicated region
    $region26: #{tpu_custom_call.1} parent=1 // pred_check
      %p46 = pneg %p45
    $region27: #{tpu_custom_call.1} parent=1 // pred_check_branch
      %48 = sbr.rel (%p46) target = $region29
    $region28: #{tpu_custom_call.1} parent=1 // pred_region
      %49 = vst [vmem:[#allocation2] sm:$0xff] 0.0
    $region29: #{tpu_custom_call.1} parent=1 // pred_fallthru
      _
    %v50 = vld [vmem:[#allocation2] sm:$0xff]
    %v51 = vld [vmem:[#allocation4] sm:$0xff]
    %v52 = vld [vmem:[#allocation7] sm:$0xff]
    %v53 = vld [vmem:[#allocation7 + $0x8] sm:$0xff]
    %v54 = vld [vmem:[#allocation7 + $0x10] sm:$0xff]
    %v55 = vld [vmem:[#allocation7 + $0x18] sm:$0xff]
    %v56 = vld [vmem:[#allocation7 + $0x20] sm:$0xff]
    %v57 = vld [vmem:[#allocation7 + $0x28] sm:$0xff]
    %v58 = vld [vmem:[#allocation7 + $0x30] sm:$0xff]
    %v59 = vld [vmem:[#allocation7 + $0x38] sm:$0xff]
    %v60 = vld [vmem:[#allocation7 + $0x40] sm:$0xff]
    %v61 = vld [vmem:[#allocation7 + $0x48] sm:$0xff]
    %v62 = vld [vmem:[#allocation7 + $0x50] sm:$0xff]
    %v63 = vld [vmem:[#allocation7 + $0x58] sm:$0xff]
    %v64 = vld [vmem:[#allocation7 + $0x60] sm:$0xff]
    %v65 = vld [vmem:[#allocation7 + $0x68] sm:$0xff]
    %v66 = vld [vmem:[#allocation7 + $0x70] sm:$0xff]
    %v67 = vld [vmem:[#allocation7 + $0x78] sm:$0xff]
    %68 = vmatprep.subr.mxu0 0.0
    %69 = vmatpush1.xpose.msra.mxu0 %v67
    %70 = vmatprep.subr.mxu0 0.0
    %71 = vmatpush1.xpose.msra.mxu0 %v66
    %72 = vmatprep.subr.mxu0 0.0
    %73 = vmatpush1.xpose.msra.mxu0 %v65
    %74 = vmatprep.subr.mxu0 0.0
    %75 = vmatpush1.xpose.msra.mxu0 %v64
    %76 = vmatprep.subr.mxu0 0.0
    %77 = vmatpush1.xpose.msra.mxu0 %v63
    %78 = vmatprep.subr.mxu0 0.0
    %79 = vmatpush1.xpose.msra.mxu0 %v62
    %80 = vmatprep.subr.mxu0 0.0
    %81 = vmatpush1.xpose.msra.mxu0 %v61
    %82 = vmatprep.subr.mxu0 0.0
    %83 = vmatpush1.xpose.msra.mxu0 %v60
    %84 = vmatprep.subr.mxu0 0.0
    %85 = vmatpush1.xpose.msra.mxu0 %v59
    %86 = vmatprep.subr.mxu0 0.0
    %87 = vmatpush1.xpose.msra.mxu0 %v58
    %88 = vmatprep.subr.mxu0 0.0
    %89 = vmatpush1.xpose.msra.mxu0 %v57
    %90 = vmatprep.subr.mxu0 0.0
    %91 = vmatpush1.xpose.msra.mxu0 %v56
    %92 = vmatprep.subr.mxu0 0.0
    %93 = vmatpush1.xpose.msra.mxu0 %v55
    %94 = vmatprep.subr.mxu0 0.0
    %95 = vmatpush1.xpose.msra.mxu0 %v54
    %96 = vmatprep.subr.mxu0 0.0
    %97 = vmatpush1.xpose.msra.mxu0 %v53
    %98 = vmatprep.subr.mxu0 0.0
    %99 = vmatpush1.xpose.msra.mxu0 %v52
    %100 = vmatprep.subr.mxu0 0.0
    %101 = vmatpush2.xpose.msra.mxu0 0.0
    %102 = vmatprep.subr.mxu0 0.0
    %103 = vmatpush2.xpose.msra.mxu0 0.0
    %104 = vmatprep.subr.mxu0 0.0
    %105 = vmatpush2.xpose.msra.mxu0 0.0
    %106 = vmatprep.subr.mxu0 0.0
    %107 = vmatpush2.xpose.msra.mxu0 0.0
    %108 = vmatprep.subr.mxu0 0.0
    %109 = vmatpush2.xpose.msra.mxu0 0.0
    %110 = vmatprep.subr.mxu0 0.0
    %111 = vmatpush2.xpose.msra.mxu0 0.0
    %112 = vmatprep.subr.mxu0 0.0
    %113 = vmatpush2.xpose.msra.mxu0 0.0
    %114 = vmatprep.subr.mxu0 0.0
    %115 = vmatpush2.xpose.msra.mxu0 0.0
    %116 = vmatprep.subr.mxu0 0.0
    %117 = vmatpush2.xpose.msra.mxu0 0.0
    %118 = vmatprep.subr.mxu0 0.0
    %119 = vmatpush2.xpose.msra.mxu0 0.0
    %120 = vmatprep.subr.mxu0 0.0
    %121 = vmatpush2.xpose.msra.mxu0 0.0
    %122 = vmatprep.subr.mxu0 0.0
    %123 = vmatpush2.xpose.msra.mxu0 0.0
    %124 = vmatprep.subr.mxu0 0.0
    %125 = vmatpush2.xpose.msra.mxu0 0.0
    %126 = vmatprep.subr.mxu0 0.0
    %127 = vmatpush2.xpose.msra.mxu0 0.0
    %128 = vmatprep.subr.mxu0 0.0
    %129 = vmatpush2.xpose.msra.mxu0 0.0
    %130 = vmatprep.subr.mxu0 0.0
    %131 = vmatpush2.xpose.msra.mxu0 0.0
    %132 = vmatprep.mubr.f32.mxu0 0.0
    %133 = vmatmul.mubr.f32.gmra.mxu0 %v51
    %v134 = vpop.f32.mrf.mxu0
    %v135 = vadd.f32 0.0, %v134
    %v136 = vpop.f32.mrf.mxu0
    %137 = vdwg.mxu0
    %v138 = vadd.f32 %v50, %v135
    %139 = vst [vmem:[#allocation2] sm:$0xff] %v138
    // Predicated region
    $region30: #{tpu_custom_call.1} parent=1 // pred_check
      %p140 = pneg %p45
    $region31: #{tpu_custom_call.1} parent=1 // pred_check_branch
      %142 = sbr.rel (%p140) target = $region33
    $region32: #{tpu_custom_call.1} parent=1 // pred_region
      %v143 = vld [vmem:[#allocation2] sm:$0xff]
      %v144 = vld [vmem:[%s3] sm:$0x1]
      %v146 = vlaneseq
      %v147 = vshrl.u32 %v146, 7
      %v148 = vsub.s32 0, %v147
      %v149 = vrot.slane %v144, %v148
      %v151 = vadd.f32 %v143, %v149
      %v152 = vmax.f32 %v151, 0.0
      %153 = vst [vmem:[#allocation9] sm:$0xff] %v152
    $region33: #{tpu_custom_call.1} parent=1 // pred_fallthru
      _
    // Predicated region
    $region34: #{tpu_custom_call.1} parent=1 // pred_check
      _
    $region35: #{tpu_custom_call.1} parent=1 // pred_check_branch
      %155 = sbr.rel (0) target = $region37
    $region36: #{tpu_custom_call.1} parent=1 // pred_region
      %s157 = ssub.s32 128, 128
      %158 = vsyncadd [#allocation6], %s157
      %s160 = sshll.u32 [#allocation9], 4
      %s161 = int_to_ptr.vmem [resolvable:$true] %s160
      %163 = dma.vmem_to_hbm [thread:$0]  %s161, 128, %s4, [#allocation6]
    $region37: #{tpu_custom_call.1} parent=1 // pred_fallthru
      _
    // Predicated region
    $region38: #{tpu_custom_call.1} parent=1 // pred_check
      _
    $region39: #{tpu_custom_call.1} parent=1 // pred_check_branch
      %165 = sbr.rel (0) target = $region41
    $region40: #{tpu_custom_call.1} parent=1 // pred_region
      %166 = dma.done [#allocation6], 128
    $region41: #{tpu_custom_call.1} parent=1 // pred_fallthru
      _
    %167 = vsyncpa [#allocation5], 1
    %168 = vsyncpa [#allocation8], 1
    %169 = vsyncpa [#allocation6], 1

</llo_original>
